<compile_context>
chip_gen: v7x
topology: tpu7x:2x2x1
jax: 0.10.0
libtpu: 0.0.40
codegen_flags: <defaults>
</compile_context>

<pallas_src>
import jax
import jax.numpy as jnp
from jax.experimental import pallas as pl
from jax.experimental.pallas import tpu as pltpu


def _critic_kernel(in_ref, act_ref, w1s_ref, w1a_ref, b1_ref,
                   w2_ref, b2_ref, w3_ref, b3_ref, o_ref):
    # in_ref : (1, S,  TB)  state features of the current agent, B on lanes
    # act_ref: (1, AD, TB)  joint-action features, B on lanes
    # weights are pre-transposed so every layer is  y = W^T @ x  (features on rows)
    xs = in_ref[0]                                                  # (S,  TB)
    xa = act_ref[0]                                                 # (AD, TB)
    h1 = (jnp.dot(w1s_ref[0], xs, preferred_element_type=jnp.float32)
          + jnp.dot(w1a_ref[0], xa, preferred_element_type=jnp.float32)
          + b1_ref[0])                                              # (H, TB)
    h1 = jnp.maximum(h1, 0.0)                                       # ReLU
    h2 = jnp.dot(w2_ref[0], h1, preferred_element_type=jnp.float32) + b2_ref[0]
    h2 = jnp.maximum(h2, 0.0)                                       # (H, TB)
    q = jnp.dot(w3_ref[0], h2, preferred_element_type=jnp.float32) + b3_ref[0]
    o_ref[0] = q.astype(o_ref.dtype)                                # (1, TB)


def maddpg_critic_ns_forward(inputs, actions, params, *, tb_max=512):
    """inputs: (bs, seq, A, state_dim); actions: (bs, seq, A, A*n_actions).
    params: stacked per-agent MLP weights (see init_params).
    Returns (bs, seq, A, 1)."""
    bs, seq, A, S = inputs.shape
    AD = actions.shape[-1]
    B = bs * seq
    H = params["w1"].shape[-1]
    D = S + AD

    # agent-major, features-on-sublanes, batch-on-lanes (no concat materialized)
    in_am = jnp.transpose(inputs, (2, 3, 0, 1)).reshape(A, S, B)    # (A, S,  B)
    act_am = jnp.transpose(actions, (2, 3, 0, 1)).reshape(A, AD, B)  # (A, AD, B)

    # lane-dense B tiling: pad B up to a multiple of the tile size
    tb = min(tb_max, pl.cdiv(B, 128) * 128)
    b_pad = pl.cdiv(B, tb) * tb
    if b_pad != B:
        pad = ((0, 0), (0, 0), (0, b_pad - B))
        in_am = jnp.pad(in_am, pad)
        act_am = jnp.pad(act_am, pad)
    nbt = b_pad // tb

    # pre-transpose / split the (tiny) per-agent weights once per call
    w1t = jnp.transpose(params["w1"], (0, 2, 1))                    # (A, H, D)
    w1s = w1t[:, :, :S]                                             # (A, H, S)
    w1a = w1t[:, :, S:]                                             # (A, H, AD)
    b1 = params["b1"][:, :, None]                                   # (A, H, 1)
    w2t = jnp.transpose(params["w2"], (0, 2, 1))                    # (A, H, H)
    b2 = params["b2"][:, :, None]                                   # (A, H, 1)
    w3t = jnp.transpose(params["w3"], (0, 2, 1))                    # (A, 1, H)
    b3 = params["b3"][:, :, None]                                   # (A, 1, 1)

    cost = pl.CostEstimate(
        flops=2 * A * b_pad * (D * H + H * H + H),
        transcendentals=0,
        bytes_accessed=4 * (A * b_pad * (D + 1)
                            + A * (D * H + H * H + H + 2 * H + 1)),
    )

    xmap = lambda j, i: (i, 0, j)   # grid = (b_tile j, agent i)
    wmap = lambda j, i: (i, 0, 0)   # weights: depend on agent only

    out_am = pl.pallas_call(
        _critic_kernel,
        out_shape=jax.ShapeDtypeStruct((A, 1, b_pad), jnp.float32),
        grid_spec=pltpu.PrefetchScalarGridSpec(
            num_scalar_prefetch=0,
            grid=(nbt, A),
            in_specs=[
                pl.BlockSpec((1, S, tb), xmap),      # state features
                pl.BlockSpec((1, AD, tb), xmap),     # action features
                pl.BlockSpec((1, H, S), wmap),       # W1^T (state part)
                pl.BlockSpec((1, H, AD), wmap),      # W1^T (action part)
                pl.BlockSpec((1, H, 1), wmap),       # b1 (column)
                pl.BlockSpec((1, H, H), wmap),       # W2^T
                pl.BlockSpec((1, H, 1), wmap),       # b2 (column)
                pl.BlockSpec((1, 1, H), wmap),       # W3^T
                pl.BlockSpec((1, 1, 1), wmap),       # b3
            ],
            out_specs=pl.BlockSpec((1, 1, tb), xmap),
        ),
        compiler_params=pltpu.CompilerParams(
            dimension_semantics=("parallel", "arbitrary"),
            vmem_limit_bytes=32 * 1024 * 1024,
        ),
        cost_estimate=cost,
    )(in_am, act_am, w1s, w1a, b1, w2t, b2, w3t, b3)                # (A, 1, b_pad)

    q = out_am[:, 0, :B].reshape(A, bs, seq)                        # (A, bs, seq)
    return jnp.transpose(q, (1, 2, 0))[..., None]                   # (bs, seq, A, 1)


def init_params(key, n_agents, input_dim, hidden_dim):
    """Deterministic per-agent MLP weights, stacked along leading agent axis
    (stored in standard x @ W orientation, as in the PyTorch module)."""
    ks = jax.random.split(key, 6)

    def u(k, shape, fan_in):
        bound = 1.0 / jnp.sqrt(fan_in)
        return jax.random.uniform(k, shape, jnp.float32, -bound, bound)

    return {
        "w1": u(ks[0], (n_agents, input_dim, hidden_dim), input_dim),
        "b1": u(ks[1], (n_agents, hidden_dim), input_dim),
        "w2": u(ks[2], (n_agents, hidden_dim, hidden_dim), hidden_dim),
        "b2": u(ks[3], (n_agents, hidden_dim), hidden_dim),
        "w3": u(ks[4], (n_agents, hidden_dim, 1), hidden_dim),
        "b3": u(ks[5], (n_agents, 1), hidden_dim),
    }


def _reference_forward(inputs, actions, params):
    """Pure-JAX reference matching the PyTorch module semantics."""
    x = jnp.concatenate([inputs, actions], axis=-1)                 # (bs, seq, A, D)
    qs = []
    for i in range(x.shape[2]):
        xi = x[:, :, i]                                             # (bs, seq, D)
        h1 = jax.nn.relu(xi @ params["w1"][i] + params["b1"][i])
        h2 = jax.nn.relu(h1 @ params["w2"][i] + params["b2"][i])
        q = h2 @ params["w3"][i] + params["b3"][i]                  # (bs, seq, 1)
        qs.append(q[:, :, None, :])                                 # (bs, seq, 1, 1)
    return jnp.concatenate(qs, axis=2)                              # (bs, seq, A, 1)


if __name__ == "__main__":
    # Small config consistent with the module:
    #   scheme['state']['vshape'] = 24, n_actions = 5, n_agents = 3
    #   obs_individual_obs = False, obs_last_action = False
    #   => input_shape = 24 + 5*3 = 39 ; hidden_dim = 32
    bs, seq = 2, 8
    n_agents, n_actions, state_dim, hidden_dim = 3, 5, 24, 32
    input_dim = state_dim + n_actions * n_agents

    key = jax.random.PRNGKey(0)
    k_in, k_act, k_par = jax.random.split(key, 3)
    inputs = jax.random.normal(k_in, (bs, seq, n_agents, state_dim), jnp.float32)
    actions = jax.random.normal(k_act, (bs, seq, n_agents, n_actions * n_agents),
                                jnp.float32)
    params = init_params(k_par, n_agents, input_dim, hidden_dim)

    out = maddpg_critic_ns_forward(inputs, actions, params)
    out = jax.block_until_ready(out)

    ref = _reference_forward(inputs, actions, params)
    assert out.shape == (bs, seq, n_agents, 1), out.shape
    assert jnp.allclose(out, ref, atol=1e-4, rtol=1e-4), float(jnp.max(jnp.abs(out - ref)))

    print("KERNEL_OK")
</pallas_src>

<mosaic_0001>
module attributes {stable_mosaic.version = 11 : i64} {
  func.func @_critic_kernel(%arg0: i32, %arg1: i32, %arg2: memref<1x24x128xf32, #tpu.memory_space<vmem>>, %arg3: memref<1x15x128xf32, #tpu.memory_space<vmem>>, %arg4: memref<1x32x24xf32, #tpu.memory_space<vmem>>, %arg5: memref<1x32x15xf32, #tpu.memory_space<vmem>>, %arg6: memref<1x32x1xf32, #tpu.memory_space<vmem>>, %arg7: memref<1x32x32xf32, #tpu.memory_space<vmem>>, %arg8: memref<1x32x1xf32, #tpu.memory_space<vmem>>, %arg9: memref<1x1x32xf32, #tpu.memory_space<vmem>>, %arg10: memref<1x1x1xf32, #tpu.memory_space<vmem>>, %arg11: memref<1x1x128xf32, #tpu.memory_space<vmem>>) attributes {dimension_semantics = [#tpu.dimension_semantics<parallel>, #tpu.dimension_semantics<arbitrary>], iteration_bounds = array<i64: 1, 3>, scalar_prefetch = 0 : i64, scratch_operands = 0 : i64, tpu.core_type = #tpu.core_type<tc>, window_params = [{transform_indices = @transform_0, window_bounds = array<i64: 1, 24, 128>}, {transform_indices = @transform_1, window_bounds = array<i64: 1, 15, 128>}, {transform_indices = @transform_2, window_bounds = array<i64: 1, 32, 24>}, {transform_indices = @transform_3, window_bounds = array<i64: 1, 32, 15>}, {transform_indices = @transform_4, window_bounds = array<i64: 1, 32, 1>}, {transform_indices = @transform_5, window_bounds = array<i64: 1, 32, 32>}, {transform_indices = @transform_6, window_bounds = array<i64: 1, 32, 1>}, {transform_indices = @transform_7, window_bounds = array<i64: 1, 1, 32>}, {transform_indices = @transform_8, window_bounds = array<i64: 1, 1, 1>}, {transform_indices = @transform_9, window_bounds = array<i64: 1, 1, 128>}]} {
    %c0 = arith.constant 0 : index
    %c0_0 = arith.constant 0 : index
    %c0_1 = arith.constant 0 : index
    %0 = vector.load %arg2[%c0, %c0_0, %c0_1] : memref<1x24x128xf32, #tpu.memory_space<vmem>>, vector<1x24x128xf32>
    %1 = vector.shape_cast %0 : vector<1x24x128xf32> to vector<24x128xf32>
    %c0_2 = arith.constant 0 : index
    %c0_3 = arith.constant 0 : index
    %c0_4 = arith.constant 0 : index
    %2 = vector.load %arg3[%c0_2, %c0_3, %c0_4] : memref<1x15x128xf32, #tpu.memory_space<vmem>>, vector<1x15x128xf32>
    %3 = vector.shape_cast %2 : vector<1x15x128xf32> to vector<15x128xf32>
    %c0_5 = arith.constant 0 : index
    %c0_6 = arith.constant 0 : index
    %c0_7 = arith.constant 0 : index
    %4 = vector.load %arg4[%c0_5, %c0_6, %c0_7] : memref<1x32x24xf32, #tpu.memory_space<vmem>>, vector<1x32x24xf32>
    %5 = vector.shape_cast %4 : vector<1x32x24xf32> to vector<32x24xf32>
    %cst = arith.constant dense<0.000000e+00> : vector<32x128xf32>
    %6 = tpu.matmul %5, %1, %cst {dimension_numbers = #tpu.dot_dimension_numbers<[1], [0], [0], [1], [0, 0, 1, 1], [], []>} : vector<32x24xf32>, vector<24x128xf32>, vector<32x128xf32> -> vector<32x128xf32>
    %c0_8 = arith.constant 0 : index
    %c0_9 = arith.constant 0 : index
    %c0_10 = arith.constant 0 : index
    %7 = vector.load %arg5[%c0_8, %c0_9, %c0_10] : memref<1x32x15xf32, #tpu.memory_space<vmem>>, vector<1x32x15xf32>
    %8 = vector.shape_cast %7 : vector<1x32x15xf32> to vector<32x15xf32>
    %cst_11 = arith.constant dense<0.000000e+00> : vector<32x128xf32>
    %9 = tpu.matmul %8, %3, %cst_11 {dimension_numbers = #tpu.dot_dimension_numbers<[1], [0], [0], [1], [0, 0, 1, 1], [], []>} : vector<32x15xf32>, vector<15x128xf32>, vector<32x128xf32> -> vector<32x128xf32>
    %10 = arith.addf %6, %9 : vector<32x128xf32>
    %c0_12 = arith.constant 0 : index
    %c0_13 = arith.constant 0 : index
    %c0_14 = arith.constant 0 : index
    %11 = vector.load %arg6[%c0_12, %c0_13, %c0_14] : memref<1x32x1xf32, #tpu.memory_space<vmem>>, vector<1x32x1xf32>
    %12 = vector.shape_cast %11 : vector<1x32x1xf32> to vector<32x1xf32>
    %13 = vector.broadcast %12 : vector<32x1xf32> to vector<32x128xf32>
    %14 = arith.addf %10, %13 : vector<32x128xf32>
    %cst_15 = arith.constant 0.000000e+00 : f32
    %15 = vector.broadcast %cst_15 : f32 to vector<32x128xf32>
    %16 = arith.maximumf %14, %15 : vector<32x128xf32>
    %c0_16 = arith.constant 0 : index
    %c0_17 = arith.constant 0 : index
    %c0_18 = arith.constant 0 : index
    %17 = vector.load %arg7[%c0_16, %c0_17, %c0_18] : memref<1x32x32xf32, #tpu.memory_space<vmem>>, vector<1x32x32xf32>
    %18 = vector.shape_cast %17 : vector<1x32x32xf32> to vector<32x32xf32>
    %cst_19 = arith.constant dense<0.000000e+00> : vector<32x128xf32>
    %19 = tpu.matmul %18, %16, %cst_19 {dimension_numbers = #tpu.dot_dimension_numbers<[1], [0], [0], [1], [0, 0, 1, 1], [], []>} : vector<32x32xf32>, vector<32x128xf32>, vector<32x128xf32> -> vector<32x128xf32>
    %c0_20 = arith.constant 0 : index
    %c0_21 = arith.constant 0 : index
    %c0_22 = arith.constant 0 : index
    %20 = vector.load %arg8[%c0_20, %c0_21, %c0_22] : memref<1x32x1xf32, #tpu.memory_space<vmem>>, vector<1x32x1xf32>
    %21 = vector.shape_cast %20 : vector<1x32x1xf32> to vector<32x1xf32>
    %22 = vector.broadcast %21 : vector<32x1xf32> to vector<32x128xf32>
    %23 = arith.addf %19, %22 : vector<32x128xf32>
    %cst_23 = arith.constant 0.000000e+00 : f32
    %24 = vector.broadcast %cst_23 : f32 to vector<32x128xf32>
    %25 = arith.maximumf %23, %24 : vector<32x128xf32>
    %c0_24 = arith.constant 0 : index
    %c0_25 = arith.constant 0 : index
    %c0_26 = arith.constant 0 : index
    %26 = vector.load %arg9[%c0_24, %c0_25, %c0_26] : memref<1x1x32xf32, #tpu.memory_space<vmem>>, vector<1x1x32xf32>
    %27 = vector.shape_cast %26 : vector<1x1x32xf32> to vector<1x32xf32>
    %cst_27 = arith.constant dense<0.000000e+00> : vector<1x128xf32>
    %28 = tpu.matmul %27, %25, %cst_27 {dimension_numbers = #tpu.dot_dimension_numbers<[1], [0], [0], [1], [0, 0, 1, 1], [], []>} : vector<1x32xf32>, vector<32x128xf32>, vector<1x128xf32> -> vector<1x128xf32>
    %c0_28 = arith.constant 0 : index
    %c0_29 = arith.constant 0 : index
    %c0_30 = arith.constant 0 : index
    %29 = vector.load %arg10[%c0_28, %c0_29, %c0_30] : memref<1x1x1xf32, #tpu.memory_space<vmem>>, vector<1x1x1xf32>
    %30 = vector.shape_cast %29 : vector<1x1x1xf32> to vector<1x1xf32>
    %31 = vector.broadcast %30 : vector<1x1xf32> to vector<1x128xf32>
    %32 = arith.addf %28, %31 : vector<1x128xf32>
    %c0_31 = arith.constant 0 : index
    %c0_32 = arith.constant 0 : index
    %c0_33 = arith.constant 0 : index
    %33 = vector.load %arg11[%c0_31, %c0_32, %c0_33] : memref<1x1x128xf32, #tpu.memory_space<vmem>>, vector<1x1x128xf32>
    %34 = vector.shape_cast %33 : vector<1x1x128xf32> to vector<1x128xf32>
    %35 = vector.shape_cast %32 : vector<1x128xf32> to vector<1x1x128xf32>
    tpu.vector_store %arg11[%c0_31, %c0_32, %c0_33], %35 {strides = array<i32>} : memref<1x1x128xf32, #tpu.memory_space<vmem>>, vector<1x1x128xf32>,
    return
  }
  func.func @transform_0(%arg0: i32, %arg1: i32) -> (i32, i32, i32) {
    %c0_i32 = arith.constant 0 : i32
    %c0_i32_0 = arith.constant 0 : i32
    return %arg1, %c0_i32, %arg0 : i32, i32, i32
  }
  func.func @transform_1(%arg0: i32, %arg1: i32) -> (i32, i32, i32) {
    %c0_i32 = arith.constant 0 : i32
    %c0_i32_0 = arith.constant 0 : i32
    return %arg1, %c0_i32, %arg0 : i32, i32, i32
  }
  func.func @transform_2(%arg0: i32, %arg1: i32) -> (i32, i32, i32) {
    %c0_i32 = arith.constant 0 : i32
    %c0_i32_0 = arith.constant 0 : i32
    %c0_i32_1 = arith.constant 0 : i32
    return %arg1, %c0_i32, %c0_i32_0 : i32, i32, i32
  }
  func.func @transform_3(%arg0: i32, %arg1: i32) -> (i32, i32, i32) {
    %c0_i32 = arith.constant 0 : i32
    %c0_i32_0 = arith.constant 0 : i32
    %c0_i32_1 = arith.constant 0 : i32
    return %arg1, %c0_i32, %c0_i32_0 : i32, i32, i32
  }
  func.func @transform_4(%arg0: i32, %arg1: i32) -> (i32, i32, i32) {
    %c0_i32 = arith.constant 0 : i32
    %c0_i32_0 = arith.constant 0 : i32
    %c0_i32_1 = arith.constant 0 : i32
    return %arg1, %c0_i32, %c0_i32_0 : i32, i32, i32
  }
  func.func @transform_5(%arg0: i32, %arg1: i32) -> (i32, i32, i32) {
    %c0_i32 = arith.constant 0 : i32
    %c0_i32_0 = arith.constant 0 : i32
    %c0_i32_1 = arith.constant 0 : i32
    return %arg1, %c0_i32, %c0_i32_0 : i32, i32, i32
  }
  func.func @transform_6(%arg0: i32, %arg1: i32) -> (i32, i32, i32) {
    %c0_i32 = arith.constant 0 : i32
    %c0_i32_0 = arith.constant 0 : i32
    %c0_i32_1 = arith.constant 0 : i32
    return %arg1, %c0_i32, %c0_i32_0 : i32, i32, i32
  }
  func.func @transform_7(%arg0: i32, %arg1: i32) -> (i32, i32, i32) {
    %c0_i32 = arith.constant 0 : i32
    %c0_i32_0 = arith.constant 0 : i32
    %c0_i32_1 = arith.constant 0 : i32
    return %arg1, %c0_i32, %c0_i32_0 : i32, i32, i32
  }
  func.func @transform_8(%arg0: i32, %arg1: i32) -> (i32, i32, i32) {
    %c0_i32 = arith.constant 0 : i32
    %c0_i32_0 = arith.constant 0 : i32
    %c0_i32_1 = arith.constant 0 : i32
    return %arg1, %c0_i32, %c0_i32_0 : i32, i32, i32
  }
  func.func @transform_9(%arg0: i32, %arg1: i32) -> (i32, i32, i32) {
    %c0_i32 = arith.constant 0 : i32
    %c0_i32_0 = arith.constant 0 : i32
    return %arg1, %c0_i32, %arg0 : i32, i32, i32
  }
}

</mosaic_0001>

<llo_original>
// kernel: tpu_custom_call.1
$region0: #{tpu_custom_call.1}
  #allocation0 [shape = 'u32[]', space=smem, size = 0x4, offset = 0x4, fixed_abs, tag = 'smem constant byte address 0x4 - core index']
  #allocation1 [shape = 'u32[144,128]{1,0:T(1,128)}', space=vmem, size = 0x12000, scoped, tag = 'internal scratch']
  %s0 = inlined_call_operand.vmem [shape: f32[3,24,128], index: 0, kind: input, shape index: {}]
  %s1 = inlined_call_operand.vmem [shape: f32[3,15,128], index: 1, kind: input, shape index: {}]
  %s2 = inlined_call_operand.vmem [shape: f32[3,32,24], index: 2, kind: input, shape index: {}]
  %s3 = inlined_call_operand.vmem [shape: f32[3,32,15], index: 3, kind: input, shape index: {}]
  %s4 = inlined_call_operand.vmem [shape: f32[3,32,1], index: 4, kind: input, shape index: {}]
  %s5 = inlined_call_operand.vmem [shape: f32[3,32,32], index: 5, kind: input, shape index: {}]
  %s6 = inlined_call_operand.vmem [shape: f32[3,32,1], index: 6, kind: input, shape index: {}]
  %s7 = inlined_call_operand.vmem [shape: f32[3,1,32], index: 7, kind: input, shape index: {}]
  %s8 = inlined_call_operand.vmem [shape: f32[3,1,1], index: 8, kind: input, shape index: {}]
  %s9 = inlined_call_operand.hbm [shape: f32[3,1,128], index: 9, kind: output, shape index: {}]
  %s10 = sld [smem:[#allocation0]]
  $region69: #{tpu_custom_call.1} parent=0
    _
  %s12 = ssub.s32 1, %s10
  %s13 = scalar_select 0, %s12, %s10
  $region1: #{tpu_custom_call.1} parent=0
    #allocation2 [shape = 'u8[1024]{0}', space=vmem, size = 0x400, scoped, tag = 'output window, operand 0']
    #allocation3 [shape = 's32[2]{0}', space=sflag, size = 0x8, scoped, tag = 'scoped memory for tpu_custom_call.1']
    %14 = vsyncpa [#allocation3], 0
    %s15 = scalar_lea.sflag [#allocation3], 1
    %16 = vsyncpa %s15, 0
    loop: start=0, step=1, limit=5
    $region2: #{tpu_custom_call.1} parent=1 // loop_pre_header
      _
    $region3: #{tpu_custom_call.1} parent=1 // loop_header
      %s18 = sphi 0, %s22
      %p19 = scmp.ge.s32.totalorder %s18, 5
      %s25 = sphi 0, %s37
      %s26 = sphi 0, %s33
      %s27 = sphi 0, %s25
      %s28 = sphi 0, %s26
      %s29 = sphi 0, %s27
      %s30 = sphi 0, %s28
      %s42 = sphi 0, %s44
      %s45 = sphi 0, %s42
      %s46 = sphi 0, %s45
      %s62 = sphi 0, %s46
      %s70 = sphi 0, %s72
      %s73 = sphi 0, %s70
      %s74 = sphi 0, %s73
      %s90 = sphi 0, %s74
      %s96 = sphi 0, %s98
      %s99 = sphi 0, %s96
      %s100 = sphi 0, %s99
      %s116 = sphi 0, %s100
      %s122 = sphi 0, %s124
      %s125 = sphi 0, %s122
      %s126 = sphi 0, %s125
      %s142 = sphi 0, %s126
      %s148 = sphi 0, %s150
      %s151 = sphi 0, %s148
      %s152 = sphi 0, %s151
      %s168 = sphi 0, %s152
      %s174 = sphi 0, %s176
      %s177 = sphi 0, %s174
      %s178 = sphi 0, %s177
      %s194 = sphi 0, %s178
      %s200 = sphi 0, %s202
      %s203 = sphi 0, %s200
      %s204 = sphi 0, %s203
      %s220 = sphi 0, %s204
      %s226 = sphi 0, %s228
      %s229 = sphi 0, %s226
      %s230 = sphi 0, %s229
      %s246 = sphi 0, %s230
      %s252 = sphi 0, %s254
      %s255 = sphi 0, %s252
      %s256 = sphi 0, %s255
      %s272 = sphi 0, %s256
      %s280 = sphi 0, %s282
      %s283 = sphi 0, %s280
      %s284 = sphi 0, %s283
      %s300 = sphi 0, %s284
    $region4: #{tpu_custom_call.1} parent=1 // loop_header_branch
      %21 = sbr.rel (%p19) target = $region8
    $region5: #{tpu_custom_call.1} parent=1 // loop_body
      %s23 = ssub.s32 %s18, 1
      %s24 = ssub.s32 %s18, 2
      %s31 = sadd.s32 1, %s26
      %p32 = scmp.ge.s32.totalorder %s31, 3
      %s33 = scalar_select %p32, 0, %s31
      %s34 = sadd.s32 1, %s25
      %s35 = scalar_select %p32, %s34, %s25
      %p36 = scmp.ge.s32.totalorder %s35, 1
      %s37 = scalar_select %p36, 0, %s35
      %s38 = ssub.s32 %s26, %s33
      %s39 = ssub.s32 %s25, %s37
      %s40 = sor.u32 %s38, %s39
      %p41 = scmp.eq.s32.totalorder %s40, 0
      %s43 = sadd.s32 %s42, 1
      %s44 = scalar_select %p41, %s42, %s43
      %p47 = pneg %p41
      %p48 = scmp.eq.s32.totalorder %s18, 2
      %p49 = por %p47, %p48
      %p50 = scmp.ne.s32.totalorder %s42, %s45
      %p51 = scmp.eq.s32.totalorder %s18, 0
      %p52 = por %p50, %p51
      %p53 = scmp.ne.s32.totalorder %s42, %s45
      %p54 = scmp.eq.s32.totalorder %s23, 2
      %p55 = por %p53, %p54
      %p56 = scmp.ne.s32.totalorder %s45, %s46
      %p57 = scmp.eq.s32.totalorder %s23, 0
      %p58 = por %p56, %p57
      %p59 = scmp.ne.s32.totalorder %s45, %s46
      %p60 = scmp.eq.s32.totalorder %s24, 2
      %p61 = por %p59, %p60
      %p63 = scmp.ne.s32.totalorder %s46, %s62
      %p64 = scmp.eq.s32.totalorder %s24, 0
      %p65 = por %p63, %p64
      %s66 = ssub.s32 %s26, %s33
      %s67 = ssub.s32 %s25, %s37
      %s68 = sor.u32 %s66, %s67
      %p69 = scmp.eq.s32.totalorder %s68, 0
      %s71 = sadd.s32 %s70, 1
      %s72 = scalar_select %p69, %s70, %s71
      %p75 = pneg %p69
      %p76 = scmp.eq.s32.totalorder %s18, 2
      %p77 = por %p75, %p76
      %p78 = scmp.ne.s32.totalorder %s70, %s73
      %p79 = scmp.eq.s32.totalorder %s18, 0
      %p80 = por %p78, %p79
      %p81 = scmp.ne.s32.totalorder %s70, %s73
      %p82 = scmp.eq.s32.totalorder %s23, 2
      %p83 = por %p81, %p82
      %p84 = scmp.ne.s32.totalorder %s73, %s74
      %p85 = scmp.eq.s32.totalorder %s23, 0
      %p86 = por %p84, %p85
      %p87 = scmp.ne.s32.totalorder %s73, %s74
      %p88 = scmp.eq.s32.totalorder %s24, 2
      %p89 = por %p87, %p88
      %p91 = scmp.ne.s32.totalorder %s74, %s90
      %p92 = scmp.eq.s32.totalorder %s24, 0
      %p93 = por %p91, %p92
      %s94 = ssub.s32 %s26, %s33
      %p95 = scmp.eq.s32.totalorder %s94, 0
      %s97 = sadd.s32 %s96, 1
      %s98 = scalar_select %p95, %s96, %s97
      %p101 = pneg %p95
      %p102 = scmp.eq.s32.totalorder %s18, 2
      %p103 = por %p101, %p102
      %p104 = scmp.ne.s32.totalorder %s96, %s99
      %p105 = scmp.eq.s32.totalorder %s18, 0
      %p106 = por %p104, %p105
      %p107 = scmp.ne.s32.totalorder %s96, %s99
      %p108 = scmp.eq.s32.totalorder %s23, 2
      %p109 = por %p107, %p108
      %p110 = scmp.ne.s32.totalorder %s99, %s100
      %p111 = scmp.eq.s32.totalorder %s23, 0
      %p112 = por %p110, %p111
      %p113 = scmp.ne.s32.totalorder %s99, %s100
      %p114 = scmp.eq.s32.totalorder %s24, 2
      %p115 = por %p113, %p114
      %p117 = scmp.ne.s32.totalorder %s100, %s116
      %p118 = scmp.eq.s32.totalorder %s24, 0
      %p119 = por %p117, %p118
      %s120 = ssub.s32 %s26, %s33
      %p121 = scmp.eq.s32.totalorder %s120, 0
      %s123 = sadd.s32 %s122, 1
      %s124 = scalar_select %p121, %s122, %s123
      %p127 = pneg %p121
      %p128 = scmp.eq.s32.totalorder %s18, 2
      %p129 = por %p127, %p128
      %p130 = scmp.ne.s32.totalorder %s122, %s125
      %p131 = scmp.eq.s32.totalorder %s18, 0
      %p132 = por %p130, %p131
      %p133 = scmp.ne.s32.totalorder %s122, %s125
      %p134 = scmp.eq.s32.totalorder %s23, 2
      %p135 = por %p133, %p134
      %p136 = scmp.ne.s32.totalorder %s125, %s126
      %p137 = scmp.eq.s32.totalorder %s23, 0
      %p138 = por %p136, %p137
      %p139 = scmp.ne.s32.totalorder %s125, %s126
      %p140 = scmp.eq.s32.totalorder %s24, 2
      %p141 = por %p139, %p140
      %p143 = scmp.ne.s32.totalorder %s126, %s142
      %p144 = scmp.eq.s32.totalorder %s24, 0
      %p145 = por %p143, %p144
      %s146 = ssub.s32 %s26, %s33
      %p147 = scmp.eq.s32.totalorder %s146, 0
      %s149 = sadd.s32 %s148, 1
      %s150 = scalar_select %p147, %s148, %s149
      %p153 = pneg %p147
      %p154 = scmp.eq.s32.totalorder %s18, 2
      %p155 = por %p153, %p154
      %p156 = scmp.ne.s32.totalorder %s148, %s151
      %p157 = scmp.eq.s32.totalorder %s18, 0
      %p158 = por %p156, %p157
      %p159 = scmp.ne.s32.totalorder %s148, %s151
      %p160 = scmp.eq.s32.totalorder %s23, 2
      %p161 = por %p159, %p160
      %p162 = scmp.ne.s32.totalorder %s151, %s152
      %p163 = scmp.eq.s32.totalorder %s23, 0
      %p164 = por %p162, %p163
      %p165 = scmp.ne.s32.totalorder %s151, %s152
      %p166 = scmp.eq.s32.totalorder %s24, 2
      %p167 = por %p165, %p166
      %p169 = scmp.ne.s32.totalorder %s152, %s168
      %p170 = scmp.eq.s32.totalorder %s24, 0
      %p171 = por %p169, %p170
      %s172 = ssub.s32 %s26, %s33
      %p173 = scmp.eq.s32.totalorder %s172, 0
      %s175 = sadd.s32 %s174, 1
      %s176 = scalar_select %p173, %s174, %s175
      %p179 = pneg %p173
      %p180 = scmp.eq.s32.totalorder %s18, 2
      %p181 = por %p179, %p180
      %p182 = scmp.ne.s32.totalorder %s174, %s177
      %p183 = scmp.eq.s32.totalorder %s18, 0
      %p184 = por %p182, %p183
      %p185 = scmp.ne.s32.totalorder %s174, %s177
      %p186 = scmp.eq.s32.totalorder %s23, 2
      %p187 = por %p185, %p186
      %p188 = scmp.ne.s32.totalorder %s177, %s178
      %p189 = scmp.eq.s32.totalorder %s23, 0
      %p190 = por %p188, %p189
      %p191 = scmp.ne.s32.totalorder %s177, %s178
      %p192 = scmp.eq.s32.totalorder %s24, 2
      %p193 = por %p191, %p192
      %p195 = scmp.ne.s32.totalorder %s178, %s194
      %p196 = scmp.eq.s32.totalorder %s24, 0
      %p197 = por %p195, %p196
      %s198 = ssub.s32 %s26, %s33
      %p199 = scmp.eq.s32.totalorder %s198, 0
      %s201 = sadd.s32 %s200, 1
      %s202 = scalar_select %p199, %s200, %s201
      %p205 = pneg %p199
      %p206 = scmp.eq.s32.totalorder %s18, 2
      %p207 = por %p205, %p206
      %p208 = scmp.ne.s32.totalorder %s200, %s203
      %p209 = scmp.eq.s32.totalorder %s18, 0
      %p210 = por %p208, %p209
      %p211 = scmp.ne.s32.totalorder %s200, %s203
      %p212 = scmp.eq.s32.totalorder %s23, 2
      %p213 = por %p211, %p212
      %p214 = scmp.ne.s32.totalorder %s203, %s204
      %p215 = scmp.eq.s32.totalorder %s23, 0
      %p216 = por %p214, %p215
      %p217 = scmp.ne.s32.totalorder %s203, %s204
      %p218 = scmp.eq.s32.totalorder %s24, 2
      %p219 = por %p217, %p218
      %p221 = scmp.ne.s32.totalorder %s204, %s220
      %p222 = scmp.eq.s32.totalorder %s24, 0
      %p223 = por %p221, %p222
      %s224 = ssub.s32 %s26, %s33
      %p225 = scmp.eq.s32.totalorder %s224, 0
      %s227 = sadd.s32 %s226, 1
      %s228 = scalar_select %p225, %s226, %s227
      %p231 = pneg %p225
      %p232 = scmp.eq.s32.totalorder %s18, 2
      %p233 = por %p231, %p232
      %p234 = scmp.ne.s32.totalorder %s226, %s229
      %p235 = scmp.eq.s32.totalorder %s18, 0
      %p236 = por %p234, %p235
      %p237 = scmp.ne.s32.totalorder %s226, %s229
      %p238 = scmp.eq.s32.totalorder %s23, 2
      %p239 = por %p237, %p238
      %p240 = scmp.ne.s32.totalorder %s229, %s230
      %p241 = scmp.eq.s32.totalorder %s23, 0
      %p242 = por %p240, %p241
      %p243 = scmp.ne.s32.totalorder %s229, %s230
      %p244 = scmp.eq.s32.totalorder %s24, 2
      %p245 = por %p243, %p244
      %p247 = scmp.ne.s32.totalorder %s230, %s246
      %p248 = scmp.eq.s32.totalorder %s24, 0
      %p249 = por %p247, %p248
      %s250 = ssub.s32 %s26, %s33
      %p251 = scmp.eq.s32.totalorder %s250, 0
      %s253 = sadd.s32 %s252, 1
      %s254 = scalar_select %p251, %s252, %s253
      %p257 = pneg %p251
      %p258 = scmp.eq.s32.totalorder %s18, 2
      %p259 = por %p257, %p258
      %p260 = scmp.ne.s32.totalorder %s252, %s255
      %p261 = scmp.eq.s32.totalorder %s18, 0
      %p262 = por %p260, %p261
      %p263 = scmp.ne.s32.totalorder %s252, %s255
      %p264 = scmp.eq.s32.totalorder %s23, 2
      %p265 = por %p263, %p264
      %p266 = scmp.ne.s32.totalorder %s255, %s256
      %p267 = scmp.eq.s32.totalorder %s23, 0
      %p268 = por %p266, %p267
      %p269 = scmp.ne.s32.totalorder %s255, %s256
      %p270 = scmp.eq.s32.totalorder %s24, 2
      %p271 = por %p269, %p270
      %p273 = scmp.ne.s32.totalorder %s256, %s272
      %p274 = scmp.eq.s32.totalorder %s24, 0
      %p275 = por %p273, %p274
      %s276 = ssub.s32 %s26, %s33
      %s277 = ssub.s32 %s25, %s37
      %s278 = sor.u32 %s276, %s277
      %p279 = scmp.eq.s32.totalorder %s278, 0
      %s281 = sadd.s32 %s280, 1
      %s282 = scalar_select %p279, %s280, %s281
      %p285 = pneg %p279
      %p286 = scmp.eq.s32.totalorder %s18, 2
      %p287 = por %p285, %p286
      %p288 = scmp.ne.s32.totalorder %s280, %s283
      %p289 = scmp.eq.s32.totalorder %s18, 0
      %p290 = por %p288, %p289
      %p291 = scmp.ne.s32.totalorder %s280, %s283
      %p292 = scmp.eq.s32.totalorder %s23, 2
      %p293 = por %p291, %p292
      %p294 = scmp.ne.s32.totalorder %s283, %s284
      %p295 = scmp.eq.s32.totalorder %s23, 0
      %p296 = por %p294, %p295
      %p297 = scmp.ne.s32.totalorder %s283, %s284
      %p298 = scmp.eq.s32.totalorder %s24, 2
      %p299 = por %p297, %p298
      %p301 = scmp.ne.s32.totalorder %s284, %s300
      %p302 = scmp.eq.s32.totalorder %s24, 0
      %p303 = por %p301, %p302
      %p304 = scmp.le.s32.totalorder 1, %s18
      %p305 = scmp.lt.s32.totalorder %s18, 4
      %p306 = pnand %p304, %p305
      %p307 = pneg %p306
      // Predicated region
      $region9: #{tpu_custom_call.1} parent=5 // pred_check
        _
      $region10: #{tpu_custom_call.1} parent=5 // pred_check_branch
        %309 = sbr.rel (%p306) target = $region12
      $region11: #{tpu_custom_call.1} parent=5 // pred_region
        %s310 = ssub.s32 %s18, 1
      $region12: #{tpu_custom_call.1} parent=5 // pred_fallthru
        _
      %p311 = scmp.lt.s32.totalorder %s18, 3
      // Predicated region
      $region13: #{tpu_custom_call.1} parent=5 // pred_check
        %p312 = pneg %p311
      $region14: #{tpu_custom_call.1} parent=5 // pred_check_branch
        %314 = sbr.rel (%p312) target = $region16
      $region15: #{tpu_custom_call.1} parent=5 // pred_region
        // Predicated region
        $region17: #{tpu_custom_call.1} parent=15 // pred_check
          %p315 = pneg %p52
        $region18: #{tpu_custom_call.1} parent=15 // pred_check_branch
          %317 = sbr.rel (%p315) target = $region20
        $region19: #{tpu_custom_call.1} parent=15 // pred_region
          %p318 = scmp.lt.s32.totalorder %s26, 2
          %s319 = scalar_select %p318, %s26, 2
          %p320 = scmp.lt.s32.totalorder %s25, 0
          %s321 = scalar_select %p320, %s25, 0
          %s322 = smul.addr %s319, 3
          %s323 = sadd.s32 %s321, %s322
          %s324 = smul.addr %s323, 8
          %s325 = scalar_lea.vmem %s0, %s324
        $region20: #{tpu_custom_call.1} parent=15 // pred_fallthru
          _
        // Predicated region
        $region21: #{tpu_custom_call.1} parent=15 // pred_check
          %p326 = pneg %p80
        $region22: #{tpu_custom_call.1} parent=15 // pred_check_branch
          %328 = sbr.rel (%p326) target = $region24
        $region23: #{tpu_custom_call.1} parent=15 // pred_region
          %p329 = scmp.lt.s32.totalorder %s26, 2
          %s330 = scalar_select %p329, %s26, 2
          %p331 = scmp.lt.s32.totalorder %s25, 0
          %s332 = scalar_select %p331, %s25, 0
          %s333 = smul.addr %s330, 2
          %s334 = sadd.s32 %s332, %s333
          %s335 = smul.addr %s334, 8
          %s336 = scalar_lea.vmem %s1, %s335
        $region24: #{tpu_custom_call.1} parent=15 // pred_fallthru
          _
        // Predicated region
        $region25: #{tpu_custom_call.1} parent=15 // pred_check
          %p337 = pneg %p106
        $region26: #{tpu_custom_call.1} parent=15 // pred_check_branch
          %339 = sbr.rel (%p337) target = $region28
        $region27: #{tpu_custom_call.1} parent=15 // pred_region
          %p340 = scmp.lt.s32.totalorder %s26, 2
          %s341 = scalar_select %p340, %s26, 2
          %s342 = smul.addr %s341, 4
          %s343 = smul.addr %s342, 8
          %s344 = scalar_lea.vmem %s2, %s343
        $region28: #{tpu_custom_call.1} parent=15 // pred_fallthru
          _
        // Predicated region
        $region29: #{tpu_custom_call.1} parent=15 // pred_check
          %p345 = pneg %p132
        $region30: #{tpu_custom_call.1} parent=15 // pred_check_branch
          %347 = sbr.rel (%p345) target = $region32
        $region31: #{tpu_custom_call.1} parent=15 // pred_region
          %p348 = scmp.lt.s32.totalorder %s26, 2
          %s349 = scalar_select %p348, %s26, 2
          %s350 = smul.addr %s349, 4
          %s351 = smul.addr %s350, 8
          %s352 = scalar_lea.vmem %s3, %s351
        $region32: #{tpu_custom_call.1} parent=15 // pred_fallthru
          _
        // Predicated region
        $region33: #{tpu_custom_call.1} parent=15 // pred_check
          %p353 = pneg %p158
        $region34: #{tpu_custom_call.1} parent=15 // pred_check_branch
          %355 = sbr.rel (%p353) target = $region36
        $region35: #{tpu_custom_call.1} parent=15 // pred_region
          %p356 = scmp.lt.s32.totalorder %s26, 2
          %s357 = scalar_select %p356, %s26, 2
          %s358 = smul.addr %s357, 4
          %s359 = smul.addr %s358, 8
          %s360 = scalar_lea.vmem %s4, %s359
        $region36: #{tpu_custom_call.1} parent=15 // pred_fallthru
          _
        // Predicated region
        $region37: #{tpu_custom_call.1} parent=15 // pred_check
          %p361 = pneg %p184
        $region38: #{tpu_custom_call.1} parent=15 // pred_check_branch
          %363 = sbr.rel (%p361) target = $region40
        $region39: #{tpu_custom_call.1} parent=15 // pred_region
          %p364 = scmp.lt.s32.totalorder %s26, 2
          %s365 = scalar_select %p364, %s26, 2
          %s366 = smul.addr %s365, 4
          %s367 = smul.addr %s366, 8
          %s368 = scalar_lea.vmem %s5, %s367
        $region40: #{tpu_custom_call.1} parent=15 // pred_fallthru
          _
        // Predicated region
        $region41: #{tpu_custom_call.1} parent=15 // pred_check
          %p369 = pneg %p210
        $region42: #{tpu_custom_call.1} parent=15 // pred_check_branch
          %371 = sbr.rel (%p369) target = $region44
        $region43: #{tpu_custom_call.1} parent=15 // pred_region
          %p372 = scmp.lt.s32.totalorder %s26, 2
          %s373 = scalar_select %p372, %s26, 2
          %s374 = smul.addr %s373, 4
          %s375 = smul.addr %s374, 8
          %s376 = scalar_lea.vmem %s6, %s375
        $region44: #{tpu_custom_call.1} parent=15 // pred_fallthru
          _
        // Predicated region
        $region45: #{tpu_custom_call.1} parent=15 // pred_check
          %p377 = pneg %p236
        $region46: #{tpu_custom_call.1} parent=15 // pred_check_branch
          %379 = sbr.rel (%p377) target = $region48
        $region47: #{tpu_custom_call.1} parent=15 // pred_region
          %p380 = scmp.lt.s32.totalorder %s26, 2
          %s381 = scalar_select %p380, %s26, 2
          %s382 = scalar_lea.vmem %s7, %s381
        $region48: #{tpu_custom_call.1} parent=15 // pred_fallthru
          _
        // Predicated region
        $region49: #{tpu_custom_call.1} parent=15 // pred_check
          %p383 = pneg %p262
        $region50: #{tpu_custom_call.1} parent=15 // pred_check_branch
          %385 = sbr.rel (%p383) target = $region52
        $region51: #{tpu_custom_call.1} parent=15 // pred_region
          %p386 = scmp.lt.s32.totalorder %s26, 2
          %s387 = scalar_select %p386, %s26, 2
          %s388 = scalar_lea.vmem %s8, %s387
        $region52: #{tpu_custom_call.1} parent=15 // pred_fallthru
          _
      $region16: #{tpu_custom_call.1} parent=5 // pred_fallthru
        _
      %p389 = scmp.le.s32.totalorder 1, %s18
      %p390 = scmp.lt.s32.totalorder %s18, 4
      %p391 = pnand %p389, %p390
      %p392 = pneg %p391
      // Predicated region
      $region53: #{tpu_custom_call.1} parent=5 // pred_check
        _
      $region54: #{tpu_custom_call.1} parent=5 // pred_check_branch
        %394 = sbr.rel (%p391) target = $region56
      $region55: #{tpu_custom_call.1} parent=5 // pred_region
        %s395 = ssub.s32 %s18, 1
        %p396 = scmp.lt.s32.totalorder %s28, 2
        %s397 = scalar_select %p396, %s28, 2
        %p398 = scmp.lt.s32.totalorder %s27, 0
        %s399 = scalar_select %p398, %s27, 0
        %s400 = smul.addr %s397, 3
        %s401 = sadd.s32 %s399, %s400
        %s402 = smul.addr %s401, 8
        %s403 = scalar_lea.vmem %s0, %s402
        %p404 = pneg %p58
        %p405 = pneg %p55
        %p406 = scmp.lt.s32.totalorder %s28, 2
        %s407 = scalar_select %p406, %s28, 2
        %p408 = scmp.lt.s32.totalorder %s27, 0
        %s409 = scalar_select %p408, %s27, 0
        %s410 = smul.addr %s407, 2
        %s411 = sadd.s32 %s409, %s410
        %s412 = smul.addr %s411, 8
        %s413 = scalar_lea.vmem %s1, %s412
        %p414 = pneg %p86
        %p415 = pneg %p83
        %p416 = scmp.lt.s32.totalorder %s28, 2
        %s417 = scalar_select %p416, %s28, 2
        %s418 = smul.addr %s417, 4
        %s419 = smul.addr %s418, 8
        %s420 = scalar_lea.vmem %s2, %s419
        %p421 = pneg %p112
        %p422 = pneg %p109
        %p423 = scmp.lt.s32.totalorder %s28, 2
        %s424 = scalar_select %p423, %s28, 2
        %s425 = smul.addr %s424, 4
        %s426 = smul.addr %s425, 8
        %s427 = scalar_lea.vmem %s3, %s426
        %p428 = pneg %p138
        %p429 = pneg %p135
        %p430 = scmp.lt.s32.totalorder %s28, 2
        %s431 = scalar_select %p430, %s28, 2
        %s432 = smul.addr %s431, 4
        %s433 = smul.addr %s432, 8
        %s434 = scalar_lea.vmem %s4, %s433
        %p435 = pneg %p164
        %p436 = pneg %p161
        %p437 = scmp.lt.s32.totalorder %s28, 2
        %s438 = scalar_select %p437, %s28, 2
        %s439 = smul.addr %s438, 4
        %s440 = smul.addr %s439, 8
        %s441 = scalar_lea.vmem %s5, %s440
        %p442 = pneg %p190
        %p443 = pneg %p187
        %p444 = scmp.lt.s32.totalorder %s28, 2
        %s445 = scalar_select %p444, %s28, 2
        %s446 = smul.addr %s445, 4
        %s447 = smul.addr %s446, 8
        %s448 = scalar_lea.vmem %s6, %s447
        %p449 = pneg %p216
        %p450 = pneg %p213
        %p451 = scmp.lt.s32.totalorder %s28, 2
        %s452 = scalar_select %p451, %s28, 2
        %s453 = scalar_lea.vmem %s7, %s452
        %p454 = pneg %p242
        %p455 = pneg %p239
        %p456 = scmp.lt.s32.totalorder %s28, 2
        %s457 = scalar_select %p456, %s28, 2
        %s458 = scalar_lea.vmem %s8, %s457
        %p459 = pneg %p268
        %p460 = pneg %p265
        %p461 = pneg %p296
        %p462 = pneg %p293
        %s463 = sand.u32 %s283, 1
        %s464 = scalar_lea.sflag [#allocation3], %s463
        %s465 = sand.u32 %s283, 1
        %s466 = scalar_lea.vmem [#allocation2], %s465
        %p467 = scmp.lt.s32.totalorder %s28, 2
        %s468 = scalar_select %p467, %s28, 2
        %p469 = scmp.lt.s32.totalorder %s27, 0
        %s470 = scalar_select %p469, %s27, 0
        %s471 = smul.addr %s468, 3
        %s472 = sadd.s32 %s470, %s471
        %s473 = smul.addr %s472, 8
        %s474 = scalar_lea.vmem %s0, %s473
        %p475 = scmp.lt.s32.totalorder %s28, 2
        %s476 = scalar_select %p475, %s28, 2
        %p477 = scmp.lt.s32.totalorder %s27, 0
        %s478 = scalar_select %p477, %s27, 0
        %s479 = smul.addr %s476, 2
        %s480 = sadd.s32 %s478, %s479
        %s481 = smul.addr %s480, 8
        %s482 = scalar_lea.vmem %s1, %s481
        %p483 = scmp.lt.s32.totalorder %s28, 2
        %s484 = scalar_select %p483, %s28, 2
        %s485 = smul.addr %s484, 4
        %s486 = smul.addr %s485, 8
        %s487 = scalar_lea.vmem %s2, %s486
        %p488 = scmp.lt.s32.totalorder %s28, 2
        %s489 = scalar_select %p488, %s28, 2
        %s490 = smul.addr %s489, 4
        %s491 = smul.addr %s490, 8
        %s492 = scalar_lea.vmem %s3, %s491
        %p493 = scmp.lt.s32.totalorder %s28, 2
        %s494 = scalar_select %p493, %s28, 2
        %s495 = smul.addr %s494, 4
        %s496 = smul.addr %s495, 8
        %s497 = scalar_lea.vmem %s4, %s496
        %p498 = scmp.lt.s32.totalorder %s28, 2
        %s499 = scalar_select %p498, %s28, 2
        %s500 = smul.addr %s499, 4
        %s501 = smul.addr %s500, 8
        %s502 = scalar_lea.vmem %s5, %s501
        %p503 = scmp.lt.s32.totalorder %s28, 2
        %s504 = scalar_select %p503, %s28, 2
        %s505 = smul.addr %s504, 4
        %s506 = smul.addr %s505, 8
        %s507 = scalar_lea.vmem %s6, %s506
        %p508 = scmp.lt.s32.totalorder %s28, 2
        %s509 = scalar_select %p508, %s28, 2
        %s510 = scalar_lea.vmem %s7, %s509
        %p511 = scmp.lt.s32.totalorder %s28, 2
        %s512 = scalar_select %p511, %s28, 2
        %s513 = scalar_lea.vmem %s8, %s512
        %v514 = vld [vmem:[%s474] sm:$0xff]
        %v515 = vld [vmem:[%s474 + $0x8] sm:$0xff]
        %v516 = vld [vmem:[%s474 + $0x10] sm:$0xff]
        %v517 = vld [vmem:[%s482] sm:$0xff]
        %v518 = vld [vmem:[%s482 + $0x8] sm:$0x7f]
        %v519 = vld [vmem:[%s487] sm:$0xff]
        %v520 = vld [vmem:[%s487 + $0x8] sm:$0xff]
        %v521 = vld [vmem:[%s487 + $0x10] sm:$0xff]
        %v522 = vld [vmem:[%s487 + $0x18] sm:$0xff]
        %v523 = vld [vmem:[%s492] sm:$0xff]
        %v524 = vld [vmem:[%s492 + $0x8] sm:$0xff]
        %v525 = vld [vmem:[%s492 + $0x10] sm:$0xff]
        %v526 = vld [vmem:[%s492 + $0x18] sm:$0xff]
        %vm527 = vcmask 121856
        %v529 = vsel %vm527, %v523, 0
        %v532 = vsel %vm527, %v524, 0
        %v535 = vsel %vm527, %v525, 0
        %v538 = vsel %vm527, %v526, 0
        %vm540 = vcmask 1046528
        %v542 = vsel %vm540, %v518, 0
        %544 = vmatprep.subr.mxu0 0.0
        %545 = vmatpush1.msra.mxu0 %v517
        %546 = vmatprep.subr.mxu0 0.0
        %547 = vmatpush1.msra.mxu0 %v542
        %548 = vmatprep.subr.mxu0 0.0
        %549 = vmatpush1.msra.mxu0 0.0
        %550 = vmatprep.subr.mxu0 0.0
        %551 = vmatpush1.msra.mxu0 0.0
        %552 = vmatprep.subr.mxu0 0.0
        %553 = vmatpush1.msra.mxu0 0.0
        %554 = vmatprep.subr.mxu0 0.0
        %555 = vmatpush1.msra.mxu0 0.0
        %556 = vmatprep.subr.mxu0 0.0
        %557 = vmatpush1.msra.mxu0 0.0
        %558 = vmatprep.subr.mxu0 0.0
        %559 = vmatpush1.msra.mxu0 0.0
        %560 = vmatprep.subr.mxu0 0.0
        %561 = vmatpush1.msra.mxu0 0.0
        %562 = vmatprep.subr.mxu0 0.0
        %563 = vmatpush1.msra.mxu0 0.0
        %564 = vmatprep.subr.mxu0 0.0
        %565 = vmatpush1.msra.mxu0 0.0
        %566 = vmatprep.subr.mxu0 0.0
        %567 = vmatpush1.msra.mxu0 0.0
        %568 = vmatprep.subr.mxu0 0.0
        %569 = vmatpush1.msra.mxu0 0.0
        %570 = vmatprep.subr.mxu0 0.0
        %571 = vmatpush1.msra.mxu0 0.0
        %572 = vmatprep.subr.mxu0 0.0
        %573 = vmatpush1.msra.mxu0 0.0
        %574 = vmatprep.subr.mxu0 0.0
        %575 = vmatpush1.msra.mxu0 0.0
        %576 = vmatprep.subr.mxu0 0.0
        %577 = vmatpush1.msra.mxu0 0.0
        %578 = vmatprep.subr.mxu0 0.0
        %579 = vmatpush1.msra.mxu0 0.0
        %580 = vmatprep.subr.mxu0 0.0
        %581 = vmatpush1.msra.mxu0 0.0
        %582 = vmatprep.subr.mxu0 0.0
        %583 = vmatpush1.msra.mxu0 0.0
        %584 = vmatprep.subr.mxu0 0.0
        %585 = vmatpush1.msra.mxu0 0.0
        %586 = vmatprep.subr.mxu0 0.0
        %587 = vmatpush1.msra.mxu0 0.0
        %588 = vmatprep.subr.mxu0 0.0
        %589 = vmatpush1.msra.mxu0 0.0
        %590 = vmatprep.subr.mxu0 0.0
        %591 = vmatpush1.msra.mxu0 0.0
        %592 = vmatprep.subr.mxu0 0.0
        %593 = vmatpush1.msra.mxu0 0.0
        %594 = vmatprep.subr.mxu0 0.0
        %595 = vmatpush1.msra.mxu0 0.0
        %596 = vmatprep.subr.mxu0 0.0
        %597 = vmatpush1.msra.mxu0 0.0
        %598 = vmatprep.subr.mxu0 0.0
        %599 = vmatpush1.msra.mxu0 0.0
        %600 = vmatprep.subr.mxu0 0.0
        %601 = vmatpush1.msra.mxu0 0.0
        %602 = vmatprep.subr.mxu0 0.0
        %603 = vmatpush1.msra.mxu0 0.0
        %604 = vmatprep.subr.mxu0 0.0
        %605 = vmatpush1.msra.mxu0 0.0
        %606 = vmatprep.subr.mxu0 0.0
        %607 = vmatpush1.msra.mxu0 0.0
        %608 = vmatprep.mubr.f32.mxu0 0.0
        %609 = vmatmul.mubr.f32.gmra.mrb[0].mxu0 %v529
        %v610 = vpop.f32.mrb[0].mxu0
        %v611 = vadd.f32 0.0, %v610
        %v612 = vpop.f32.mrb[0].mxu0
        %613 = vmatprep.mubr.f32.mxu0 0.0
        %614 = vmatmul.mubr.f32.gmra.mrb[0].mxu0 %v532
        %v615 = vpop.f32.mrb[0].mxu0
        %v616 = vadd.f32 0.0, %v615
        %v617 = vpop.f32.mrb[0].mxu0
        %618 = vmatprep.mubr.f32.mxu0 0.0
        %619 = vmatmul.mubr.f32.gmra.mrb[0].mxu0 %v535
        %v620 = vpop.f32.mrb[0].mxu0
        %v621 = vadd.f32 0.0, %v620
        %v622 = vpop.f32.mrb[0].mxu0
        %623 = vmatprep.mubr.f32.mxu0 0.0
        %624 = vmatmul.mubr.f32.gmra.mrb[0].mxu0 %v538
        %v625 = vpop.f32.mrb[0].mxu0
        %v626 = vadd.f32 0.0, %v625
        %v627 = vpop.f32.mrb[0].mxu0
        %628 = vdwg.mxu0
        %vm629 = vcmask 195584
        %v631 = vsel %vm629, %v519, 0
        %v634 = vsel %vm629, %v520, 0
        %v637 = vsel %vm629, %v521, 0
        %v640 = vsel %vm629, %v522, 0
        %642 = vmatprep.subr.mxu0 0.0
        %643 = vmatpush1.msra.mxu0 %v514
        %644 = vmatprep.subr.mxu0 0.0
        %645 = vmatpush1.msra.mxu0 %v515
        %646 = vmatprep.subr.mxu0 0.0
        %647 = vmatpush1.msra.mxu0 %v516
        %648 = vmatprep.subr.mxu0 0.0
        %649 = vmatpush1.msra.mxu0 0.0
        %650 = vmatprep.subr.mxu0 0.0
        %651 = vmatpush1.msra.mxu0 0.0
        %652 = vmatprep.subr.mxu0 0.0
        %653 = vmatpush1.msra.mxu0 0.0
        %654 = vmatprep.subr.mxu0 0.0
        %655 = vmatpush1.msra.mxu0 0.0
        %656 = vmatprep.subr.mxu0 0.0
        %657 = vmatpush1.msra.mxu0 0.0
        %658 = vmatprep.subr.mxu0 0.0
        %659 = vmatpush1.msra.mxu0 0.0
        %660 = vmatprep.subr.mxu0 0.0
        %661 = vmatpush1.msra.mxu0 0.0
        %662 = vmatprep.subr.mxu0 0.0
        %663 = vmatpush1.msra.mxu0 0.0
        %664 = vmatprep.subr.mxu0 0.0
        %665 = vmatpush1.msra.mxu0 0.0
        %666 = vmatprep.subr.mxu0 0.0
        %667 = vmatpush1.msra.mxu0 0.0
        %668 = vmatprep.subr.mxu0 0.0
        %669 = vmatpush1.msra.mxu0 0.0
        %670 = vmatprep.subr.mxu0 0.0
        %671 = vmatpush1.msra.mxu0 0.0
        %672 = vmatprep.subr.mxu0 0.0
        %673 = vmatpush1.msra.mxu0 0.0
        %674 = vmatprep.subr.mxu0 0.0
        %675 = vmatpush1.msra.mxu0 0.0
        %676 = vmatprep.subr.mxu0 0.0
        %677 = vmatpush1.msra.mxu0 0.0
        %678 = vmatprep.subr.mxu0 0.0
        %679 = vmatpush1.msra.mxu0 0.0
        %680 = vmatprep.subr.mxu0 0.0
        %681 = vmatpush1.msra.mxu0 0.0
        %682 = vmatprep.subr.mxu0 0.0
        %683 = vmatpush1.msra.mxu0 0.0
        %684 = vmatprep.subr.mxu0 0.0
        %685 = vmatpush1.msra.mxu0 0.0
        %686 = vmatprep.subr.mxu0 0.0
        %687 = vmatpush1.msra.mxu0 0.0
        %688 = vmatprep.subr.mxu0 0.0
        %689 = vmatpush1.msra.mxu0 0.0
        %690 = vmatprep.subr.mxu0 0.0
        %691 = vmatpush1.msra.mxu0 0.0
        %692 = vmatprep.subr.mxu0 0.0
        %693 = vmatpush1.msra.mxu0 0.0
        %694 = vmatprep.subr.mxu0 0.0
        %695 = vmatpush1.msra.mxu0 0.0
        %696 = vmatprep.subr.mxu0 0.0
        %697 = vmatpush1.msra.mxu0 0.0
        %698 = vmatprep.subr.mxu0 0.0
        %699 = vmatpush1.msra.mxu0 0.0
        %700 = vmatprep.subr.mxu0 0.0
        %701 = vmatpush1.msra.mxu0 0.0
        %702 = vmatprep.subr.mxu0 0.0
        %703 = vmatpush1.msra.mxu0 0.0
        %704 = vmatprep.subr.mxu0 0.0
        %705 = vmatpush1.msra.mxu0 0.0
        %706 = vmatprep.mubr.f32.mxu0 0.0
        %707 = vmatmul.mubr.f32.gmra.mrb[0].mxu0 %v631
        %v708 = vpop.f32.mrb[0].mxu0
        %v709 = vadd.f32 %v611, %v708
        %v710 = vpop.f32.mrb[0].mxu0
        %711 = vmatprep.mubr.f32.mxu0 0.0
        %712 = vmatmul.mubr.f32.gmra.mrb[0].mxu0 %v634
        %v713 = vpop.f32.mrb[0].mxu0
        %v714 = vadd.f32 %v616, %v713
        %v715 = vpop.f32.mrb[0].mxu0
        %716 = vmatprep.mubr.f32.mxu0 0.0
        %717 = vmatmul.mubr.f32.gmra.mrb[0].mxu0 %v637
        %v718 = vpop.f32.mrb[0].mxu0
        %v719 = vadd.f32 %v621, %v718
        %v720 = vpop.f32.mrb[0].mxu0
        %721 = vmatprep.mubr.f32.mxu0 0.0
        %722 = vmatmul.mubr.f32.gmra.mrb[0].mxu0 %v640
        %v723 = vpop.f32.mrb[0].mxu0
        %v724 = vadd.f32 %v626, %v723
        %v725 = vpop.f32.mrb[0].mxu0
        %726 = vdwg.mxu0
        %v727 = vld [vmem:[%s497] sm:$0xff]
        %v728 = vld [vmem:[%s497 + $0x8] sm:$0xff]
        %v729 = vld [vmem:[%s497 + $0x10] sm:$0xff]
        %v730 = vld [vmem:[%s497 + $0x18] sm:$0xff]
        %732 = vset.pattern.permute.xlu0 0
        %733 = vperm.xlu0 %732, %v727
        %v734 = vpop.permute.xlu0 %733
        %737 = vset.pattern.permute.xlu0 0
        %738 = vperm.xlu0 %737, %v728
        %v739 = vpop.permute.xlu0 %738
        %742 = vset.pattern.permute.xlu0 0
        %743 = vperm.xlu0 %742, %v729
        %v744 = vpop.permute.xlu0 %743
        %747 = vset.pattern.permute.xlu0 0
        %748 = vperm.xlu0 %747, %v730
        %v749 = vpop.permute.xlu0 %748
        %v751 = vadd.f32 %v709, %v734
        %v752 = vadd.f32 %v714, %v739
        %v753 = vadd.f32 %v719, %v744
        %v754 = vadd.f32 %v724, %v749
        %v755 = vmax.f32 %v751, 0.0
        %v756 = vmax.f32 %v752, 0.0
        %v757 = vmax.f32 %v753, 0.0
        %v758 = vmax.f32 %v754, 0.0
        %v759 = vld [vmem:[%s502] sm:$0xff]
        %v760 = vld [vmem:[%s502 + $0x8] sm:$0xff]
        %v761 = vld [vmem:[%s502 + $0x10] sm:$0xff]
        %v762 = vld [vmem:[%s502 + $0x18] sm:$0xff]
        %v763 = vld [vmem:[%s507] sm:$0xff]
        %v764 = vld [vmem:[%s507 + $0x8] sm:$0xff]
        %v765 = vld [vmem:[%s507 + $0x10] sm:$0xff]
        %v766 = vld [vmem:[%s507 + $0x18] sm:$0xff]
        %768 = vset.pattern.permute.xlu0 0
        %769 = vperm.xlu0 %768, %v763
        %v770 = vpop.permute.xlu0 %769
        %773 = vset.pattern.permute.xlu0 0
        %774 = vperm.xlu0 %773, %v764
        %v775 = vpop.permute.xlu0 %774
        %778 = vset.pattern.permute.xlu0 0
        %779 = vperm.xlu0 %778, %v765
        %v780 = vpop.permute.xlu0 %779
        %783 = vset.pattern.permute.xlu0 0
        %784 = vperm.xlu0 %783, %v766
        %v785 = vpop.permute.xlu0 %784
        %vm787 = vcmask 261120
        %v789 = vsel %vm787, %v759, 0
        %v792 = vsel %vm787, %v760, 0
        %v795 = vsel %vm787, %v761, 0
        %v798 = vsel %vm787, %v762, 0
        %800 = vmatprep.subr.mxu0 0.0
        %801 = vmatpush1.msra.mxu0 %v755
        %802 = vmatprep.subr.mxu0 0.0
        %803 = vmatpush1.msra.mxu0 %v756
        %804 = vmatprep.subr.mxu0 0.0
        %805 = vmatpush1.msra.mxu0 %v757
        %806 = vmatprep.subr.mxu0 0.0
        %807 = vmatpush1.msra.mxu0 %v758
        %808 = vmatprep.subr.mxu0 0.0
        %809 = vmatpush1.msra.mxu0 0.0
        %810 = vmatprep.subr.mxu0 0.0
        %811 = vmatpush1.msra.mxu0 0.0
        %812 = vmatprep.subr.mxu0 0.0
        %813 = vmatpush1.msra.mxu0 0.0
        %814 = vmatprep.subr.mxu0 0.0
        %815 = vmatpush1.msra.mxu0 0.0
        %816 = vmatprep.subr.mxu0 0.0
        %817 = vmatpush1.msra.mxu0 0.0
        %818 = vmatprep.subr.mxu0 0.0
        %819 = vmatpush1.msra.mxu0 0.0
        %820 = vmatprep.subr.mxu0 0.0
        %821 = vmatpush1.msra.mxu0 0.0
        %822 = vmatprep.subr.mxu0 0.0
        %823 = vmatpush1.msra.mxu0 0.0
        %824 = vmatprep.subr.mxu0 0.0
        %825 = vmatpush1.msra.mxu0 0.0
        %826 = vmatprep.subr.mxu0 0.0
        %827 = vmatpush1.msra.mxu0 0.0
        %828 = vmatprep.subr.mxu0 0.0
        %829 = vmatpush1.msra.mxu0 0.0
        %830 = vmatprep.subr.mxu0 0.0
        %831 = vmatpush1.msra.mxu0 0.0
        %832 = vmatprep.subr.mxu0 0.0
        %833 = vmatpush1.msra.mxu0 0.0
        %834 = vmatprep.subr.mxu0 0.0
        %835 = vmatpush1.msra.mxu0 0.0
        %836 = vmatprep.subr.mxu0 0.0
        %837 = vmatpush1.msra.mxu0 0.0
        %838 = vmatprep.subr.mxu0 0.0
        %839 = vmatpush1.msra.mxu0 0.0
        %840 = vmatprep.subr.mxu0 0.0
        %841 = vmatpush1.msra.mxu0 0.0
        %842 = vmatprep.subr.mxu0 0.0
        %843 = vmatpush1.msra.mxu0 0.0
        %844 = vmatprep.subr.mxu0 0.0
        %845 = vmatpush1.msra.mxu0 0.0
        %846 = vmatprep.subr.mxu0 0.0
        %847 = vmatpush1.msra.mxu0 0.0
        %848 = vmatprep.subr.mxu0 0.0
        %849 = vmatpush1.msra.mxu0 0.0
        %850 = vmatprep.subr.mxu0 0.0
        %851 = vmatpush1.msra.mxu0 0.0
        %852 = vmatprep.subr.mxu0 0.0
        %853 = vmatpush1.msra.mxu0 0.0
        %854 = vmatprep.subr.mxu0 0.0
        %855 = vmatpush1.msra.mxu0 0.0
        %856 = vmatprep.subr.mxu0 0.0
        %857 = vmatpush1.msra.mxu0 0.0
        %858 = vmatprep.subr.mxu0 0.0
        %859 = vmatpush1.msra.mxu0 0.0
        %860 = vmatprep.subr.mxu0 0.0
        %861 = vmatpush1.msra.mxu0 0.0
        %862 = vmatprep.subr.mxu0 0.0
        %863 = vmatpush1.msra.mxu0 0.0
        %864 = vmatprep.mubr.f32.mxu0 0.0
        %865 = vmatmul.mubr.f32.gmra.mrb[0].mxu0 %v789
        %v866 = vpop.f32.mrb[0].mxu0
        %v867 = vadd.f32 %v770, %v866
        %v868 = vpop.f32.mrb[0].mxu0
        %869 = vmatprep.mubr.f32.mxu0 0.0
        %870 = vmatmul.mubr.f32.gmra.mrb[0].mxu0 %v792
        %v871 = vpop.f32.mrb[0].mxu0
        %v872 = vadd.f32 %v775, %v871
        %v873 = vpop.f32.mrb[0].mxu0
        %874 = vmatprep.mubr.f32.mxu0 0.0
        %875 = vmatmul.mubr.f32.gmra.mrb[0].mxu0 %v795
        %v876 = vpop.f32.mrb[0].mxu0
        %v877 = vadd.f32 %v780, %v876
        %v878 = vpop.f32.mrb[0].mxu0
        %879 = vmatprep.mubr.f32.mxu0 0.0
        %880 = vmatmul.mubr.f32.gmra.mrb[0].mxu0 %v798
        %v881 = vpop.f32.mrb[0].mxu0
        %v882 = vadd.f32 %v785, %v881
        %v883 = vpop.f32.mrb[0].mxu0
        %884 = vdwg.mxu0
        %v885 = vmax.f32 %v867, 0.0
        %v886 = vmax.f32 %v872, 0.0
        %v887 = vmax.f32 %v877, 0.0
        %v888 = vmax.f32 %v882, 0.0
        %v889 = vld [vmem:[%s510] sm:$0x1]
        %v890 = vld [vmem:[%s513] sm:$0x1]
        %892 = vset.pattern.permute.xlu0 0
        %893 = vperm.xlu0 %892, %v890
        %v894 = vpop.permute.xlu0 %893
        %v896 = vlaneseq
        %v897 = vshrl.u32 %v896, 7
        %v898 = vsub.s32 0, %v897
        %v899 = vrot.slane %v894, %v898
        %v901 = vsel %vm787, %v889, 0
        %903 = vmatprep.subr.mxu0 0.0
        %904 = vmatpush1.msra.mxu0 %v885
        %905 = vmatprep.subr.mxu0 0.0
        %906 = vmatpush1.msra.mxu0 %v886
        %907 = vmatprep.subr.mxu0 0.0
        %908 = vmatpush1.msra.mxu0 %v887
        %909 = vmatprep.subr.mxu0 0.0
        %910 = vmatpush1.msra.mxu0 %v888
        %911 = vmatprep.subr.mxu0 0.0
        %912 = vmatpush1.msra.mxu0 0.0
        %913 = vmatprep.subr.mxu0 0.0
        %914 = vmatpush1.msra.mxu0 0.0
        %915 = vmatprep.subr.mxu0 0.0
        %916 = vmatpush1.msra.mxu0 0.0
        %917 = vmatprep.subr.mxu0 0.0
        %918 = vmatpush1.msra.mxu0 0.0
        %919 = vmatprep.subr.mxu0 0.0
        %920 = vmatpush1.msra.mxu0 0.0
        %921 = vmatprep.subr.mxu0 0.0
        %922 = vmatpush1.msra.mxu0 0.0
        %923 = vmatprep.subr.mxu0 0.0
        %924 = vmatpush1.msra.mxu0 0.0
        %925 = vmatprep.subr.mxu0 0.0
        %926 = vmatpush1.msra.mxu0 0.0
        %927 = vmatprep.subr.mxu0 0.0
        %928 = vmatpush1.msra.mxu0 0.0
        %929 = vmatprep.subr.mxu0 0.0
        %930 = vmatpush1.msra.mxu0 0.0
        %931 = vmatprep.subr.mxu0 0.0
        %932 = vmatpush1.msra.mxu0 0.0
        %933 = vmatprep.subr.mxu0 0.0
        %934 = vmatpush1.msra.mxu0 0.0
        %935 = vmatprep.subr.mxu0 0.0
        %936 = vmatpush1.msra.mxu0 0.0
        %937 = vmatprep.subr.mxu0 0.0
        %938 = vmatpush1.msra.mxu0 0.0
        %939 = vmatprep.subr.mxu0 0.0
        %940 = vmatpush1.msra.mxu0 0.0
        %941 = vmatprep.subr.mxu0 0.0
        %942 = vmatpush1.msra.mxu0 0.0
        %943 = vmatprep.subr.mxu0 0.0
        %944 = vmatpush1.msra.mxu0 0.0
        %945 = vmatprep.subr.mxu0 0.0
        %946 = vmatpush1.msra.mxu0 0.0
        %947 = vmatprep.subr.mxu0 0.0
        %948 = vmatpush1.msra.mxu0 0.0
        %949 = vmatprep.subr.mxu0 0.0
        %950 = vmatpush1.msra.mxu0 0.0
        %951 = vmatprep.subr.mxu0 0.0
        %952 = vmatpush1.msra.mxu0 0.0
        %953 = vmatprep.subr.mxu0 0.0
        %954 = vmatpush1.msra.mxu0 0.0
        %955 = vmatprep.subr.mxu0 0.0
        %956 = vmatpush1.msra.mxu0 0.0
        %957 = vmatprep.subr.mxu0 0.0
        %958 = vmatpush1.msra.mxu0 0.0
        %959 = vmatprep.subr.mxu0 0.0
        %960 = vmatpush1.msra.mxu0 0.0
        %961 = vmatprep.subr.mxu0 0.0
        %962 = vmatpush1.msra.mxu0 0.0
        %963 = vmatprep.subr.mxu0 0.0
        %964 = vmatpush1.msra.mxu0 0.0
        %965 = vmatprep.subr.mxu0 0.0
        %966 = vmatpush1.msra.mxu0 0.0
        %967 = vmatprep.mubr.f32.mxu0 0.0
        %968 = vmatmul.mubr.f32.gmra.mrb[0].mxu0 %v901
        %v969 = vpop.f32.mrb[0].mxu0
        %v970 = vadd.f32 %v899, %v969
        %v971 = vpop.f32.mrb[0].mxu0
        %972 = vdwg.mxu0
        %973 = vst [vmem:[%s466] sm:$0x1] %v970
        %s974 = sand.u32 %s283, 1
        %s975 = scalar_lea.sflag [#allocation3], %s974
        %s976 = sand.u32 %s283, 1
        %s977 = scalar_lea.vmem [#allocation2], %s976
        // Predicated region
        $region57: #{tpu_custom_call.1} parent=55 // pred_check
          %p978 = pneg %p293
        $region58: #{tpu_custom_call.1} parent=55 // pred_check_branch
          %980 = sbr.rel (%p978) target = $region60
        $region59: #{tpu_custom_call.1} parent=55 // pred_region
          %s982 = ssub.s32 16, 16
          %983 = vsyncadd %s975, %s982
          %s984 = sadd.s32 %s27, %s28
          %s985 = smul.addr %s984, 16
          %s986 = scalar_lea.hbm %s9, %s985
          %s988 = sshll.u32 %s977, 4
          %s989 = int_to_ptr.vmem [resolvable:$true] %s988
          %991 = dma.vmem_to_hbm [thread:$0]  %s989, 16, %s986, %s975
        $region60: #{tpu_custom_call.1} parent=55 // pred_fallthru
          _
      $region56: #{tpu_custom_call.1} parent=5 // pred_fallthru
        _
      %p992 = scmp.le.s32.totalorder 2, %s18
      // Predicated region
      $region61: #{tpu_custom_call.1} parent=5 // pred_check
        %p993 = pneg %p992
      $region62: #{tpu_custom_call.1} parent=5 // pred_check_branch
        %995 = sbr.rel (%p993) target = $region64
      $region63: #{tpu_custom_call.1} parent=5 // pred_region
        %s996 = ssub.s32 %s18, 2
        // Predicated region
        $region65: #{tpu_custom_call.1} parent=63 // pred_check
          %p997 = pneg %p299
        $region66: #{tpu_custom_call.1} parent=63 // pred_check_branch
          %999 = sbr.rel (%p997) target = $region68
        $region67: #{tpu_custom_call.1} parent=63 // pred_region
          %s1000 = sand.u32 %s284, 1
          %s1001 = scalar_lea.sflag [#allocation3], %s1000
          %s1002 = sand.u32 %s284, 1
          %s1003 = scalar_lea.vmem [#allocation2], %s1002
          %1004 = dma.done %s1001, 16
        $region68: #{tpu_custom_call.1} parent=63 // pred_fallthru
          _
      $region64: #{tpu_custom_call.1} parent=5 // pred_fallthru
        _
    $region6: #{tpu_custom_call.1} parent=1 // loop_footer
      %s22 = sadd.s32 1, %s18
    $region7: #{tpu_custom_call.1} parent=1 // loop_footer_branch
      %17 = sbr.rel target = $region3
    $region8: #{tpu_custom_call.1} parent=1 // loop_exit
      _
    %1005 = vsyncpa [#allocation3], 1
    %s1006 = scalar_lea.sflag [#allocation3], 1
    %1007 = vsyncpa %s1006, 1

</llo_original>
